<compile_context>
chip_gen: v6e
topology: v6e:2x2x1
jax: 0.10.0
libtpu: 0.0.40
codegen_flags: <defaults>
</compile_context>

<pallas_src>
import math

import jax
import jax.numpy as jnp
from jax.experimental import pallas as pl
from jax.experimental.pallas import tpu as pltpu

_LANE = 128
_SUBLANE = 8
_SMALL_N_THRESHOLD = 32


def _round_up(x, m):
    return ((x + m - 1) // m) * m


def _tile_bytes(shape, itemsize):
    """VMEM footprint of a tile with honest (sublane, lane) padding."""
    dims = list(shape)
    if len(dims) >= 1:
        dims[-1] = _round_up(dims[-1], _LANE)
    if len(dims) >= 2:
        sub = _SUBLANE * max(1, 4 // int(itemsize))  # 8 f32 / 16 bf16 / 32 i8
        dims[-2] = _round_up(dims[-2], sub)
    size = 1
    for d in dims:
        size *= int(d)
    return size * int(itemsize)


def _tensorcores_per_chip():
    try:
        kind = jax.devices()[0].device_kind.lower()
        if "v7" in kind or "7x" in kind:
            return 2
    except Exception:
        pass
    return 1


def _vmem_plan():
    """(vmem_limit_bytes, pipelined_block_budget_bytes) for this generation."""
    try:
        cap = int(pltpu.get_tpu_info().vmem_capacity_bytes)
    except Exception:
        cap = 64 * 1024 * 1024  # conservative fallback (v7x floor)
    # Leave headroom below physical capacity for compiler temporaries.
    limit = min(cap - 8 * 1024 * 1024, 100 * 1024 * 1024)
    limit = max(limit, 32 * 1024 * 1024)
    budget = int(limit * 0.65)
    return int(limit), int(budget)


def _choose_batch_block(B, N, Din, dp_out, in_itemsize, w_itemsize,
                        vmem_budget_bytes, tc_per_chip):
    # Double-buffered pipelined blocks per batch element (x, adj, out),
    # using padded tile sizes.
    per_b = 2 * (_tile_bytes((N, Din), in_itemsize)
                 + _tile_bytes((N, N), in_itemsize)
                 + _tile_bytes((N, dp_out), in_itemsize))
    # f32 kernel intermediates (h and the aggregation accumulator).
    per_b += 2 * _tile_bytes((N, dp_out), 4)
    # bf16 operand copies created by in-kernel casts.
    per_b += (_tile_bytes((N, Din), 2) + _tile_bytes((N, N), 2)
              + _tile_bytes((N, dp_out), 2))
    # Grid-invariant weight/bias (still double-buffered by the pipeline).
    fixed = 2 * (_tile_bytes((Din, dp_out), w_itemsize)
                 + _tile_bytes((1, dp_out), 4))
    avail = max(vmem_budget_bytes - fixed, per_b)
    bblk = max(1, avail // max(per_b, 1))
    bblk = min(bblk, B)
    # On multi-TC chips keep >=2 grid steps per TensorCore so each core still
    # pipelines DMA against compute; on 1-TC chips take the largest block.
    if tc_per_chip >= 2 and B >= 2 * tc_per_chip:
        bblk = min(bblk, pl.cdiv(B, 2 * tc_per_chip))
    return int(max(1, bblk))


def _make_gcn_kernel(use_bf16_mxu):
    mxu_dtype = jnp.bfloat16 if use_bf16_mxu else None

    def kernel(x_ref, adj_ref, w_ref, b_ref, out_ref):
        # x_ref:   (Bblk, N, Din)
        # adj_ref: (Bblk, N, N)
        # w_ref:   (Din, Dp_out)   (transposed + padded + cast in the wrapper)
        # b_ref:   (1, Dp_out)     (f32)
        # out_ref: (Bblk, N, Dp_out)
        bblk, n, d_in = x_ref.shape
        d_out = w_ref.shape[1]

        # ---- Projection: one fused (Bblk*N, Din) @ (Din, Dp_out) MXU matmul.
        # Reshape before the cast so it happens on sublane-aligned f32 rows
        # (layout-free when N is a multiple of 8, as for n_atom=8).
        x2d = x_ref[...].reshape(bblk * n, d_in)
        if mxu_dtype is not None:
            x2d = x2d.astype(mxu_dtype)
        h = jnp.dot(x2d, w_ref[...], preferred_element_type=jnp.float32)
        h = h.reshape(bblk, n, d_out) + b_ref[...]          # bias in f32

        # ---- Aggregation: out[b] = adj[b] @ h[b].
        adj = adj_ref[...]
        if n <= _SMALL_N_THRESHOLD:
            # Tiny graphs: an (N,N)@(N,Dout) push wastes a 256x256 MXU and
            # pays result-FIFO drain per push; do a VPU broadcast-MAC instead
            # (frees the vector-extended slot), accumulating in f32.
            acc = adj[:, :, 0:1].astype(jnp.float32) * h[:, 0:1, :]
            for j in range(1, n):
                acc = acc + adj[:, :, j:j + 1].astype(jnp.float32) * h[:, j:j + 1, :]
            out = acc
        else:
            if mxu_dtype is not None:
                adj = adj.astype(mxu_dtype)
                h = h.astype(mxu_dtype)
            out = jnp.einsum("bij,bjd->bid", adj, h,
                             preferred_element_type=jnp.float32)

        out_ref[...] = out.astype(out_ref.dtype)

    return kernel


def gcn_layer_forward(x, adj, weight, bias, *, mxu_bf16=True):
    """x: (B, N, Din), adj: (B, N, N), weight: (Dout, Din), bias: (Dout,).

    Returns (out, adj) with out = adj @ (x @ W^T + b), like the PyTorch module.
    With mxu_bf16=True (default) matmul operands are bf16, accumulation f32.
    """
    B, N, Din = x.shape
    Dout = weight.shape[0]

    # Lane-dense padding of the *output* feature dim only (unmasked stores).
    dp_out = _round_up(Dout, _LANE)

    use_bf16_mxu = bool(mxu_bf16) and x.dtype == jnp.float32
    w_dtype = jnp.bfloat16 if use_bf16_mxu else x.dtype

    # Weight is tiny and grid-invariant: pad + cast host-side (once).
    w_p = jnp.pad(weight.T, ((0, 0), (0, dp_out - Dout))).astype(w_dtype)
    b_p = jnp.pad(bias, (0, dp_out - Dout)).reshape(1, dp_out).astype(jnp.float32)

    in_itemsize = jnp.dtype(x.dtype).itemsize
    w_itemsize = jnp.dtype(w_dtype).itemsize
    out_itemsize = in_itemsize

    vmem_limit, vmem_budget = _vmem_plan()
    tc_per_chip = _tensorcores_per_chip()
    bblk = _choose_batch_block(B, N, Din, dp_out, in_itemsize, w_itemsize,
                               vmem_budget, tc_per_chip)
    grid_b = pl.cdiv(B, bblk)

    flops = 2 * B * N * Din * dp_out + 2 * B * N * N * dp_out
    bytes_accessed = (x.size * in_itemsize + adj.size * in_itemsize
                      + w_p.size * w_itemsize + b_p.size * 4
                      + B * N * dp_out * out_itemsize)

    out_p = pl.pallas_call(
        _make_gcn_kernel(use_bf16_mxu),
        out_shape=jax.ShapeDtypeStruct((B, N, dp_out), x.dtype),
        grid_spec=pltpu.PrefetchScalarGridSpec(
            num_scalar_prefetch=0,
            grid=(grid_b,),
            in_specs=[
                pl.BlockSpec((bblk, N, Din), lambda b: (b, 0, 0)),
                pl.BlockSpec((bblk, N, N), lambda b: (b, 0, 0)),
                pl.BlockSpec((Din, dp_out), lambda b: (0, 0)),
                pl.BlockSpec((1, dp_out), lambda b: (0, 0)),
            ],
            out_specs=pl.BlockSpec((bblk, N, dp_out), lambda b: (b, 0, 0)),
        ),
        compiler_params=pltpu.CompilerParams(
            dimension_semantics=("parallel",),
            vmem_limit_bytes=vmem_limit,
        ),
        cost_estimate=pl.CostEstimate(
            flops=flops, transcendentals=0, bytes_accessed=bytes_accessed),
    )(x, adj, w_p, b_p)

    out = out_p[:, :, :Dout]
    # Module returns (out, adj); adj passes through untouched.
    return out, adj


def init_gcn_params(key, in_dim, out_dim):
    """Parameter init mirroring the PyTorch module.

    weight: xavier_uniform_ over shape (out_dim, in_dim)
    bias:   nn.Linear default, U(-1/sqrt(in_dim), 1/sqrt(in_dim))
    """
    kw, kb = jax.random.split(key)
    w_bound = math.sqrt(6.0 / (in_dim + out_dim))
    weight = jax.random.uniform(
        kw, (out_dim, in_dim), minval=-w_bound, maxval=w_bound,
        dtype=jnp.float32)
    b_bound = 1.0 / math.sqrt(in_dim)
    bias = jax.random.uniform(
        kb, (out_dim,), minval=-b_bound, maxval=b_bound, dtype=jnp.float32)
    return weight, bias


if __name__ == "__main__":
    # Small shapes consistent with the module: batch=2, n_atom=8,
    # in_dim=32, out_dim=32.
    B, N, Din, Dout = 2, 8, 32, 32

    key = jax.random.PRNGKey(0)
    k_x, k_adj, k_params = jax.random.split(key, 3)

    x = jax.random.normal(k_x, (B, N, Din), dtype=jnp.float32)
    # Symmetric-ish adjacency with self loops.
    adj_raw = jax.random.uniform(k_adj, (B, N, N), dtype=jnp.float32)
    adj = 0.5 * (adj_raw + jnp.swapaxes(adj_raw, -1, -2)) + jnp.eye(
        N, dtype=jnp.float32)

    weight, bias = init_gcn_params(k_params, Din, Dout)

    out, adj_out = gcn_layer_forward(x, adj, weight, bias)
    out = jax.block_until_ready(out)
    adj_out = jax.block_until_ready(adj_out)

    assert out.shape == (B, N, Dout)
    assert adj_out.shape == (B, N, N)

    # Reference checks in plain JAX (same math as the PyTorch forward).
    ref_f32 = jnp.matmul(adj, jnp.matmul(x, weight.T) + bias)
    # bf16-operand / f32-accumulation emulation of the kernel's matmul path.
    x_bf = x.astype(jnp.bfloat16).astype(jnp.float32)
    w_bf = weight.T.astype(jnp.bfloat16).astype(jnp.float32)
    ref_bf16 = jnp.matmul(adj, jnp.matmul(x_bf, w_bf) + bias)

    assert jnp.allclose(out, ref_bf16, atol=1e-3, rtol=1e-3), \
        "mismatch vs bf16-emulated reference"
    assert jnp.allclose(out, ref_f32, atol=2e-1, rtol=5e-2), \
        "mismatch vs f32 reference (beyond bf16 tolerance)"

    print("KERNEL_OK")
</pallas_src>

<mosaic_0001>
module attributes {stable_mosaic.version = 11 : i64} {
  func.func @kernel(%arg0: i32, %arg1: memref<2x8x32xf32, #tpu.memory_space<vmem>>, %arg2: memref<2x8x8xf32, #tpu.memory_space<vmem>>, %arg3: memref<32x128xbf16, #tpu.memory_space<vmem>>, %arg4: memref<1x128xf32, #tpu.memory_space<vmem>>, %arg5: memref<2x8x128xf32, #tpu.memory_space<vmem>>) attributes {dimension_semantics = [#tpu.dimension_semantics<parallel>], iteration_bounds = array<i64: 1>, scalar_prefetch = 0 : i64, scratch_operands = 0 : i64, tpu.core_type = #tpu.core_type<tc>, window_params = [{transform_indices = @transform_0, window_bounds = array<i64: 2, 8, 32>}, {transform_indices = @transform_1, window_bounds = array<i64: 2, 8, 8>}, {pipeline_mode = #tpu.pipeline_mode<synchronous>, transform_indices = @transform_2, window_bounds = array<i64: 32, 128>}, {pipeline_mode = #tpu.pipeline_mode<synchronous>, transform_indices = @transform_3, window_bounds = array<i64: 1, 128>}, {transform_indices = @transform_4, window_bounds = array<i64: 2, 8, 128>}]} {
    %c0 = arith.constant 0 : index
    %c0_0 = arith.constant 0 : index
    %c0_1 = arith.constant 0 : index
    %0 = vector.load %arg1[%c0, %c0_0, %c0_1] : memref<2x8x32xf32, #tpu.memory_space<vmem>>, vector<2x8x32xf32>
    %1 = vector.shape_cast %0 : vector<2x8x32xf32> to vector<16x32xf32>
    %2 = arith.truncf %1 : vector<16x32xf32> to vector<16x32xbf16>
    %c0_2 = arith.constant 0 : index
    %c0_3 = arith.constant 0 : index
    %3 = vector.load %arg3[%c0_2, %c0_3] : memref<32x128xbf16, #tpu.memory_space<vmem>>, vector<32x128xbf16>
    %cst = arith.constant dense<0.000000e+00> : vector<16x128xf32>
    %4 = tpu.matmul %2, %3, %cst {dimension_numbers = #tpu.dot_dimension_numbers<[1], [0], [0], [1], [0, 0, 1, 1], [], []>} : vector<16x32xbf16>, vector<32x128xbf16>, vector<16x128xf32> -> vector<16x128xf32>
    %5 = vector.shape_cast %4 : vector<16x128xf32> to vector<2x8x128xf32>
    %c0_4 = arith.constant 0 : index
    %c0_5 = arith.constant 0 : index
    %6 = vector.load %arg4[%c0_4, %c0_5] : memref<1x128xf32, #tpu.memory_space<vmem>>, vector<1x128xf32>
    %7 = vector.shape_cast %6 : vector<1x128xf32> to vector<1x1x128xf32>
    %8 = vector.broadcast %7 : vector<1x1x128xf32> to vector<2x8x128xf32>
    %9 = arith.addf %5, %8 : vector<2x8x128xf32>
    %c0_6 = arith.constant 0 : index
    %c0_7 = arith.constant 0 : index
    %c0_8 = arith.constant 0 : index
    %10 = vector.load %arg2[%c0_6, %c0_7, %c0_8] : memref<2x8x8xf32, #tpu.memory_space<vmem>>, vector<2x8x8xf32>
    %11 = vector.extract_strided_slice %10 {offsets = [0, 0, 0], sizes = [2, 8, 1], strides = [1, 1, 1]} : vector<2x8x8xf32> to vector<2x8x1xf32>
    %12 = vector.extract_strided_slice %9 {offsets = [0, 0, 0], sizes = [2, 1, 128], strides = [1, 1, 1]} : vector<2x8x128xf32> to vector<2x1x128xf32>
    %13 = vector.broadcast %11 : vector<2x8x1xf32> to vector<2x8x128xf32>
    %14 = vector.broadcast %12 : vector<2x1x128xf32> to vector<2x8x128xf32>
    %15 = arith.mulf %13, %14 : vector<2x8x128xf32>
    %16 = vector.extract_strided_slice %10 {offsets = [0, 0, 1], sizes = [2, 8, 1], strides = [1, 1, 1]} : vector<2x8x8xf32> to vector<2x8x1xf32>
    %17 = vector.extract_strided_slice %9 {offsets = [0, 1, 0], sizes = [2, 1, 128], strides = [1, 1, 1]} : vector<2x8x128xf32> to vector<2x1x128xf32>
    %18 = vector.broadcast %16 : vector<2x8x1xf32> to vector<2x8x128xf32>
    %19 = vector.broadcast %17 : vector<2x1x128xf32> to vector<2x8x128xf32>
    %20 = arith.mulf %18, %19 : vector<2x8x128xf32>
    %21 = arith.addf %15, %20 : vector<2x8x128xf32>
    %22 = vector.extract_strided_slice %10 {offsets = [0, 0, 2], sizes = [2, 8, 1], strides = [1, 1, 1]} : vector<2x8x8xf32> to vector<2x8x1xf32>
    %23 = vector.extract_strided_slice %9 {offsets = [0, 2, 0], sizes = [2, 1, 128], strides = [1, 1, 1]} : vector<2x8x128xf32> to vector<2x1x128xf32>
    %24 = vector.broadcast %22 : vector<2x8x1xf32> to vector<2x8x128xf32>
    %25 = vector.broadcast %23 : vector<2x1x128xf32> to vector<2x8x128xf32>
    %26 = arith.mulf %24, %25 : vector<2x8x128xf32>
    %27 = arith.addf %21, %26 : vector<2x8x128xf32>
    %28 = vector.extract_strided_slice %10 {offsets = [0, 0, 3], sizes = [2, 8, 1], strides = [1, 1, 1]} : vector<2x8x8xf32> to vector<2x8x1xf32>
    %29 = vector.extract_strided_slice %9 {offsets = [0, 3, 0], sizes = [2, 1, 128], strides = [1, 1, 1]} : vector<2x8x128xf32> to vector<2x1x128xf32>
    %30 = vector.broadcast %28 : vector<2x8x1xf32> to vector<2x8x128xf32>
    %31 = vector.broadcast %29 : vector<2x1x128xf32> to vector<2x8x128xf32>
    %32 = arith.mulf %30, %31 : vector<2x8x128xf32>
    %33 = arith.addf %27, %32 : vector<2x8x128xf32>
    %34 = vector.extract_strided_slice %10 {offsets = [0, 0, 4], sizes = [2, 8, 1], strides = [1, 1, 1]} : vector<2x8x8xf32> to vector<2x8x1xf32>
    %35 = vector.extract_strided_slice %9 {offsets = [0, 4, 0], sizes = [2, 1, 128], strides = [1, 1, 1]} : vector<2x8x128xf32> to vector<2x1x128xf32>
    %36 = vector.broadcast %34 : vector<2x8x1xf32> to vector<2x8x128xf32>
    %37 = vector.broadcast %35 : vector<2x1x128xf32> to vector<2x8x128xf32>
    %38 = arith.mulf %36, %37 : vector<2x8x128xf32>
    %39 = arith.addf %33, %38 : vector<2x8x128xf32>
    %40 = vector.extract_strided_slice %10 {offsets = [0, 0, 5], sizes = [2, 8, 1], strides = [1, 1, 1]} : vector<2x8x8xf32> to vector<2x8x1xf32>
    %41 = vector.extract_strided_slice %9 {offsets = [0, 5, 0], sizes = [2, 1, 128], strides = [1, 1, 1]} : vector<2x8x128xf32> to vector<2x1x128xf32>
    %42 = vector.broadcast %40 : vector<2x8x1xf32> to vector<2x8x128xf32>
    %43 = vector.broadcast %41 : vector<2x1x128xf32> to vector<2x8x128xf32>
    %44 = arith.mulf %42, %43 : vector<2x8x128xf32>
    %45 = arith.addf %39, %44 : vector<2x8x128xf32>
    %46 = vector.extract_strided_slice %10 {offsets = [0, 0, 6], sizes = [2, 8, 1], strides = [1, 1, 1]} : vector<2x8x8xf32> to vector<2x8x1xf32>
    %47 = vector.extract_strided_slice %9 {offsets = [0, 6, 0], sizes = [2, 1, 128], strides = [1, 1, 1]} : vector<2x8x128xf32> to vector<2x1x128xf32>
    %48 = vector.broadcast %46 : vector<2x8x1xf32> to vector<2x8x128xf32>
    %49 = vector.broadcast %47 : vector<2x1x128xf32> to vector<2x8x128xf32>
    %50 = arith.mulf %48, %49 : vector<2x8x128xf32>
    %51 = arith.addf %45, %50 : vector<2x8x128xf32>
    %52 = vector.extract_strided_slice %10 {offsets = [0, 0, 7], sizes = [2, 8, 1], strides = [1, 1, 1]} : vector<2x8x8xf32> to vector<2x8x1xf32>
    %53 = vector.extract_strided_slice %9 {offsets = [0, 7, 0], sizes = [2, 1, 128], strides = [1, 1, 1]} : vector<2x8x128xf32> to vector<2x1x128xf32>
    %54 = vector.broadcast %52 : vector<2x8x1xf32> to vector<2x8x128xf32>
    %55 = vector.broadcast %53 : vector<2x1x128xf32> to vector<2x8x128xf32>
    %56 = arith.mulf %54, %55 : vector<2x8x128xf32>
    %57 = arith.addf %51, %56 : vector<2x8x128xf32>
    %c0_9 = arith.constant 0 : index
    %c0_10 = arith.constant 0 : index
    %c0_11 = arith.constant 0 : index
    %58 = vector.load %arg5[%c0_9, %c0_10, %c0_11] : memref<2x8x128xf32, #tpu.memory_space<vmem>>, vector<2x8x128xf32>
    tpu.vector_store %arg5[%c0_9, %c0_10, %c0_11], %57 {strides = array<i32>} : memref<2x8x128xf32, #tpu.memory_space<vmem>>, vector<2x8x128xf32>,
    return
  }
  func.func @transform_0(%arg0: i32) -> (i32, i32, i32) {
    %c0_i32 = arith.constant 0 : i32
    %c0_i32_0 = arith.constant 0 : i32
    %c0_i32_1 = arith.constant 0 : i32
    return %arg0, %c0_i32, %c0_i32_0 : i32, i32, i32
  }
  func.func @transform_1(%arg0: i32) -> (i32, i32, i32) {
    %c0_i32 = arith.constant 0 : i32
    %c0_i32_0 = arith.constant 0 : i32
    %c0_i32_1 = arith.constant 0 : i32
    return %arg0, %c0_i32, %c0_i32_0 : i32, i32, i32
  }
  func.func @transform_2(%arg0: i32) -> (i32, i32) {
    %c0_i32 = arith.constant 0 : i32
    %c0_i32_0 = arith.constant 0 : i32
    %c0_i32_1 = arith.constant 0 : i32
    return %c0_i32, %c0_i32_0 : i32, i32
  }
  func.func @transform_3(%arg0: i32) -> (i32, i32) {
    %c0_i32 = arith.constant 0 : i32
    %c0_i32_0 = arith.constant 0 : i32
    %c0_i32_1 = arith.constant 0 : i32
    return %c0_i32, %c0_i32_0 : i32, i32
  }
  func.func @transform_4(%arg0: i32) -> (i32, i32, i32) {
    %c0_i32 = arith.constant 0 : i32
    %c0_i32_0 = arith.constant 0 : i32
    %c0_i32_1 = arith.constant 0 : i32
    return %arg0, %c0_i32, %c0_i32_0 : i32, i32, i32
  }
}

</mosaic_0001>

<llo_original>
// kernel: tpu_custom_call.1
$region0: #{tpu_custom_call.1}
  #allocation0 [shape = 'u32[]', space=smem, size = 0x4, offset = 0x4, fixed_abs, tag = 'smem constant byte address 0x4 - core index']
  #allocation1 [shape = 'u32[144,128]{1,0:T(1,128)}', space=vmem, size = 0x12000, scoped, tag = 'internal scratch']
  %s0 = inlined_call_operand.hbm [shape: f32[2,8,32], index: 0, kind: input, shape index: {}]
  %s1 = inlined_call_operand.hbm [shape: f32[2,8,8], index: 1, kind: input, shape index: {}]
  %s2 = inlined_call_operand.hbm [shape: bf16[32,128], index: 2, kind: input, shape index: {}]
  %s3 = inlined_call_operand.vmem [shape: f32[1,128], index: 3, kind: input, shape index: {}]
  %s4 = inlined_call_operand.hbm [shape: f32[2,8,128], index: 4, kind: output, shape index: {}]
  %s5 = sld [smem:[#allocation0]]
  $region38: #{tpu_custom_call.1} parent=0
    _
  %s7 = ssub.s32 1, %s5
  %s8 = scalar_select 0, %s7, %s5
  $region1: #{tpu_custom_call.1} parent=0
    #allocation2 [shape = 'u8[8192]{0}', space=vmem, size = 0x2000, scoped, tag = 'input window, operand 0, single buffered']
    #allocation3 [shape = 's32[1]{0}', space=sflag, size = 0x4, scoped, tag = 'scoped memory for tpu_custom_call.1']
    #allocation4 [shape = 's32[1]{0}', space=sflag, size = 0x4, scoped, tag = 'scoped memory for tpu_custom_call.1']
    #allocation5 [shape = 'u8[8192]{0}', space=vmem, size = 0x2000, scoped, tag = 'input window, operand 1, single buffered']
    #allocation6 [shape = 's32[1]{0}', space=sflag, size = 0x4, scoped, tag = 'scoped memory for tpu_custom_call.1']
    #allocation7 [shape = 'u8[8192]{0}', space=vmem, size = 0x2000, scoped, tag = 'input window, operand 2, single buffered']
    #allocation8 [shape = 'u8[8192]{0}', space=vmem, size = 0x2000, scoped, tag = 'output window, operand 0, single buffered']
    %9 = vsyncpa [#allocation3], 0
    %10 = vsyncpa [#allocation6], 0
    %11 = vsyncpa [#allocation4], 0
    // Predicated region
    $region2: #{tpu_custom_call.1} parent=1 // pred_check
      _
    $region3: #{tpu_custom_call.1} parent=1 // pred_check_branch
      %13 = sbr.rel (0) target = $region5
    $region4: #{tpu_custom_call.1} parent=1 // pred_region
      %s15 = ssub.s32 256, 256
      %16 = vsyncadd [#allocation3], %s15
      %s17 = sshll.u32 [#allocation2], 4
      %s18 = int_to_ptr.vmem [resolvable:$true] %s17
      %23 = dma.hbm_to_vmem [thread:$0]  %s0, 256, %s18, [#allocation3], 128, 128, 8
    $region5: #{tpu_custom_call.1} parent=1 // pred_fallthru
      _
    // Predicated region
    $region6: #{tpu_custom_call.1} parent=1 // pred_check
      _
    $region7: #{tpu_custom_call.1} parent=1 // pred_check_branch
      %25 = sbr.rel (0) target = $region9
    $region8: #{tpu_custom_call.1} parent=1 // pred_region
      %s27 = ssub.s32 256, 256
      %28 = vsyncadd [#allocation6], %s27
      %s29 = sshll.u32 [#allocation5], 4
      %s30 = int_to_ptr.vmem [resolvable:$true] %s29
      %35 = dma.hbm_to_vmem [thread:$0]  %s1, 256, %s30, [#allocation6], 128, 128, 8
    $region9: #{tpu_custom_call.1} parent=1 // pred_fallthru
      _
    // Predicated region
    $region10: #{tpu_custom_call.1} parent=1 // pred_check
      _
    $region11: #{tpu_custom_call.1} parent=1 // pred_check_branch
      %37 = sbr.rel (0) target = $region13
    $region12: #{tpu_custom_call.1} parent=1 // pred_region
      %s39 = ssub.s32 256, 256
      %40 = vsyncadd [#allocation6], %s39
      %s41 = sshll.u32 [#allocation7], 4
      %s42 = int_to_ptr.vmem [resolvable:$true] %s41
      %47 = dma.hbm_to_vmem [thread:$0]  %s2, 256, %s42, [#allocation6], 64, 64, 4
    $region13: #{tpu_custom_call.1} parent=1 // pred_fallthru
      _
    // Predicated region
    $region14: #{tpu_custom_call.1} parent=1 // pred_check
      _
    $region15: #{tpu_custom_call.1} parent=1 // pred_check_branch
      %49 = sbr.rel (0) target = $region17
    $region16: #{tpu_custom_call.1} parent=1 // pred_region
      _
    $region17: #{tpu_custom_call.1} parent=1 // pred_fallthru
      _
    // Predicated region
    $region18: #{tpu_custom_call.1} parent=1 // pred_check
      _
    $region19: #{tpu_custom_call.1} parent=1 // pred_check_branch
      %51 = sbr.rel (0) target = $region21
    $region20: #{tpu_custom_call.1} parent=1 // pred_region
      %52 = dma.done [#allocation3], 256
    $region21: #{tpu_custom_call.1} parent=1 // pred_fallthru
      _
    // Predicated region
    $region22: #{tpu_custom_call.1} parent=1 // pred_check
      _
    $region23: #{tpu_custom_call.1} parent=1 // pred_check_branch
      %54 = sbr.rel (0) target = $region25
    $region24: #{tpu_custom_call.1} parent=1 // pred_region
      %55 = dma.done [#allocation6], 256
    $region25: #{tpu_custom_call.1} parent=1 // pred_fallthru
      _
    // Predicated region
    $region26: #{tpu_custom_call.1} parent=1 // pred_check
      _
    $region27: #{tpu_custom_call.1} parent=1 // pred_check_branch
      %57 = sbr.rel (0) target = $region29
    $region28: #{tpu_custom_call.1} parent=1 // pred_region
      %58 = dma.done [#allocation6], 256
    $region29: #{tpu_custom_call.1} parent=1 // pred_fallthru
      _
    %v60 = vld [vmem:[#allocation2] sm:$0xff]
    %v61 = vld [vmem:[#allocation2 + $0x8] sm:$0xff]
    %v62 = vpack.c.bf16 %v61, %v60
    %v63 = vld [vmem:[#allocation7] sm:$0xf]
    %v64 = vld [vmem:[#allocation7 + $0x4] sm:$0xf]
    %v65 = vld [vmem:[#allocation7 + $0x8] sm:$0xf]
    %v66 = vld [vmem:[#allocation7 + $0xc] sm:$0xf]
    %v71 = vunpack.c.l.b16 %v63
    %v72 = vunpack.c.l.b16 %v64
    %v73 = vunpack.c.l.b16 %v65
    %v74 = vunpack.c.l.b16 %v66
    %v75 = vpack.c.b16 %v72, %v71
    %v76 = vpack.c.b16 %v74, %v73
    %vm79 = vcmask 261120
    %v81 = vsel %vm79, %v62, 0
    %83 = vmatprep.subr.bf16.mxu0 0
    %84 = vmatpush1.bf16.msra.mxu0 0
    %85 = vmatprep.subr.bf16.mxu0 0
    %86 = vmatpush1.bf16.msra.mxu0 0
    %87 = vmatprep.subr.bf16.mxu0 0
    %88 = vmatpush1.bf16.msra.mxu0 0
    %89 = vmatprep.subr.bf16.mxu0 0
    %90 = vmatpush1.bf16.msra.mxu0 0
    %91 = vmatprep.subr.bf16.mxu0 0
    %92 = vmatpush1.bf16.msra.mxu0 0
    %93 = vmatprep.subr.bf16.mxu0 0
    %94 = vmatpush1.bf16.msra.mxu0 0
    %95 = vmatprep.subr.bf16.mxu0 0
    %96 = vmatpush1.bf16.msra.mxu0 %v76
    %97 = vmatprep.subr.bf16.mxu0 0
    %98 = vmatpush1.bf16.msra.mxu0 %v75
    %99 = vmatprep.subr.bf16.mxu0 0
    %100 = vmatpush2.bf16.msra.mxu0 0
    %101 = vmatprep.subr.bf16.mxu0 0
    %102 = vmatpush2.bf16.msra.mxu0 0
    %103 = vmatprep.subr.bf16.mxu0 0
    %104 = vmatpush2.bf16.msra.mxu0 0
    %105 = vmatprep.subr.bf16.mxu0 0
    %106 = vmatpush2.bf16.msra.mxu0 0
    %107 = vmatprep.subr.bf16.mxu0 0
    %108 = vmatpush2.bf16.msra.mxu0 0
    %109 = vmatprep.subr.bf16.mxu0 0
    %110 = vmatpush2.bf16.msra.mxu0 0
    %111 = vmatprep.subr.bf16.mxu0 0
    %112 = vmatpush2.bf16.msra.mxu0 0
    %113 = vmatprep.subr.bf16.mxu0 0
    %114 = vmatpush2.bf16.msra.mxu0 0
    %115 = vmatprep.mubr.bf16.mxu0 0
    %116 = vmatmul.mubr.bf16.gmra.mxu0 %v81
    %v117 = vpop.f32.mrf.mxu0
    %v118 = vadd.f32 0.0, %v117
    %v119 = vpop.f32.mrf.mxu0
    %v120 = vpop.f32.mrf.mxu0
    %v121 = vadd.f32 0.0, %v120
    %v122 = vpop.f32.mrf.mxu0
    %123 = vdwg.mxu0
    %v124 = vld [vmem:[%s3] sm:$0x1]
    %v126 = vlaneseq
    %v127 = vshrl.u32 %v126, 7
    %v128 = vsub.s32 0, %v127
    %v129 = vrot.slane %v124, %v128
    %v131 = vadd.f32 %v118, %v129
    %v132 = vadd.f32 %v121, %v129
    %v133 = vld [vmem:[#allocation5] sm:$0xff]
    %v134 = vld [vmem:[#allocation5 + $0x8] sm:$0xff]
    %136 = vset.pattern.permute.xlu0 0
    %137 = vperm.xlu0 %136, %v133
    %v138 = vpop.permute.xlu0 %137
    %141 = vset.pattern.permute.xlu0 0
    %142 = vperm.xlu0 %141, %v134
    %v143 = vpop.permute.xlu0 %142
    %v145 = vlaneseq
    %v146 = vshrl.u32 %v145, 7
    %v147 = vsub.s32 0, %v146
    %v148 = vrot.slane %v131, %v147
    %v149 = vlaneseq
    %v150 = vshrl.u32 %v149, 7
    %v151 = vsub.s32 0, %v150
    %v152 = vrot.slane %v132, %v151
    %v153 = vmul.f32 %v138, %v148
    %v154 = vmul.f32 %v143, %v152
    %155 = vset.pattern.permute.xlu0 1
    %156 = vperm.xlu0 %155, %v133
    %v157 = vpop.permute.xlu0 %156
    %159 = vset.pattern.permute.xlu0 1
    %160 = vperm.xlu0 %159, %v134
    %v161 = vpop.permute.xlu0 %160
    %v163 = vlaneseq
    %v164 = vshrl.u32 %v163, 7
    %v165 = vsub.s32 1, %v164
    %v166 = vrot.slane %v131, %v165
    %v167 = vlaneseq
    %v168 = vshrl.u32 %v167, 7
    %v169 = vsub.s32 1, %v168
    %v170 = vrot.slane %v132, %v169
    %v171 = vmul.f32 %v157, %v166
    %v172 = vmul.f32 %v161, %v170
    %v173 = vadd.f32 %v153, %v171
    %v174 = vadd.f32 %v154, %v172
    %175 = vset.pattern.permute.xlu0 2
    %176 = vperm.xlu0 %175, %v133
    %v177 = vpop.permute.xlu0 %176
    %179 = vset.pattern.permute.xlu0 2
    %180 = vperm.xlu0 %179, %v134
    %v181 = vpop.permute.xlu0 %180
    %v183 = vlaneseq
    %v184 = vshrl.u32 %v183, 7
    %v185 = vsub.s32 2, %v184
    %v186 = vrot.slane %v131, %v185
    %v187 = vlaneseq
    %v188 = vshrl.u32 %v187, 7
    %v189 = vsub.s32 2, %v188
    %v190 = vrot.slane %v132, %v189
    %v191 = vmul.f32 %v177, %v186
    %v192 = vmul.f32 %v181, %v190
    %v193 = vadd.f32 %v173, %v191
    %v194 = vadd.f32 %v174, %v192
    %195 = vset.pattern.permute.xlu0 3
    %196 = vperm.xlu0 %195, %v133
    %v197 = vpop.permute.xlu0 %196
    %199 = vset.pattern.permute.xlu0 3
    %200 = vperm.xlu0 %199, %v134
    %v201 = vpop.permute.xlu0 %200
    %v203 = vlaneseq
    %v204 = vshrl.u32 %v203, 7
    %v205 = vsub.s32 3, %v204
    %v206 = vrot.slane %v131, %v205
    %v207 = vlaneseq
    %v208 = vshrl.u32 %v207, 7
    %v209 = vsub.s32 3, %v208
    %v210 = vrot.slane %v132, %v209
    %v211 = vmul.f32 %v197, %v206
    %v212 = vmul.f32 %v201, %v210
    %v213 = vadd.f32 %v193, %v211
    %v214 = vadd.f32 %v194, %v212
    %215 = vset.pattern.permute.xlu0 4
    %216 = vperm.xlu0 %215, %v133
    %v217 = vpop.permute.xlu0 %216
    %219 = vset.pattern.permute.xlu0 4
    %220 = vperm.xlu0 %219, %v134
    %v221 = vpop.permute.xlu0 %220
    %v223 = vlaneseq
    %v224 = vshrl.u32 %v223, 7
    %v225 = vsub.s32 4, %v224
    %v226 = vrot.slane %v131, %v225
    %v227 = vlaneseq
    %v228 = vshrl.u32 %v227, 7
    %v229 = vsub.s32 4, %v228
    %v230 = vrot.slane %v132, %v229
    %v231 = vmul.f32 %v217, %v226
    %v232 = vmul.f32 %v221, %v230
    %v233 = vadd.f32 %v213, %v231
    %v234 = vadd.f32 %v214, %v232
    %235 = vset.pattern.permute.xlu0 5
    %236 = vperm.xlu0 %235, %v133
    %v237 = vpop.permute.xlu0 %236
    %239 = vset.pattern.permute.xlu0 5
    %240 = vperm.xlu0 %239, %v134
    %v241 = vpop.permute.xlu0 %240
    %v243 = vlaneseq
    %v244 = vshrl.u32 %v243, 7
    %v245 = vsub.s32 5, %v244
    %v246 = vrot.slane %v131, %v245
    %v247 = vlaneseq
    %v248 = vshrl.u32 %v247, 7
    %v249 = vsub.s32 5, %v248
    %v250 = vrot.slane %v132, %v249
    %v251 = vmul.f32 %v237, %v246
    %v252 = vmul.f32 %v241, %v250
    %v253 = vadd.f32 %v233, %v251
    %v254 = vadd.f32 %v234, %v252
    %255 = vset.pattern.permute.xlu0 6
    %256 = vperm.xlu0 %255, %v133
    %v257 = vpop.permute.xlu0 %256
    %259 = vset.pattern.permute.xlu0 6
    %260 = vperm.xlu0 %259, %v134
    %v261 = vpop.permute.xlu0 %260
    %v263 = vlaneseq
    %v264 = vshrl.u32 %v263, 7
    %v265 = vsub.s32 6, %v264
    %v266 = vrot.slane %v131, %v265
    %v267 = vlaneseq
    %v268 = vshrl.u32 %v267, 7
    %v269 = vsub.s32 6, %v268
    %v270 = vrot.slane %v132, %v269
    %v271 = vmul.f32 %v257, %v266
    %v272 = vmul.f32 %v261, %v270
    %v273 = vadd.f32 %v253, %v271
    %v274 = vadd.f32 %v254, %v272
    %275 = vset.pattern.permute.xlu0 7
    %276 = vperm.xlu0 %275, %v133
    %v277 = vpop.permute.xlu0 %276
    %279 = vset.pattern.permute.xlu0 7
    %280 = vperm.xlu0 %279, %v134
    %v281 = vpop.permute.xlu0 %280
    %v283 = vlaneseq
    %v284 = vshrl.u32 %v283, 7
    %v285 = vsub.s32 7, %v284
    %v286 = vrot.slane %v131, %v285
    %v287 = vlaneseq
    %v288 = vshrl.u32 %v287, 7
    %v289 = vsub.s32 7, %v288
    %v290 = vrot.slane %v132, %v289
    %v291 = vmul.f32 %v277, %v286
    %v292 = vmul.f32 %v281, %v290
    %v293 = vadd.f32 %v273, %v291
    %v294 = vadd.f32 %v274, %v292
    %295 = vst [vmem:[#allocation8] sm:$0xff] %v293
    %296 = vst [vmem:[#allocation8 + $0x8] sm:$0xff] %v294
    // Predicated region
    $region30: #{tpu_custom_call.1} parent=1 // pred_check
      _
    $region31: #{tpu_custom_call.1} parent=1 // pred_check_branch
      %298 = sbr.rel (0) target = $region33
    $region32: #{tpu_custom_call.1} parent=1 // pred_region
      %s300 = ssub.s32 256, 256
      %301 = vsyncadd [#allocation4], %s300
      %s302 = sshll.u32 [#allocation8], 4
      %s303 = int_to_ptr.vmem [resolvable:$true] %s302
      %308 = dma.vmem_to_hbm [thread:$0]  %s303, 256, %s4, [#allocation4], 128, 128, 8
    $region33: #{tpu_custom_call.1} parent=1 // pred_fallthru
      _
    // Predicated region
    $region34: #{tpu_custom_call.1} parent=1 // pred_check
      _
    $region35: #{tpu_custom_call.1} parent=1 // pred_check_branch
      %310 = sbr.rel (0) target = $region37
    $region36: #{tpu_custom_call.1} parent=1 // pred_region
      %311 = dma.done [#allocation4], 256
    $region37: #{tpu_custom_call.1} parent=1 // pred_fallthru
      _
    %312 = vsyncpa [#allocation3], 1
    %313 = vsyncpa [#allocation6], 1
    %314 = vsyncpa [#allocation4], 1

</llo_original>
